<compile_context>
chip_gen: v6e
topology: v6e:2x2x1
jax: 0.10.0
libtpu: 0.0.40
codegen_flags: <defaults>
</compile_context>

<pallas_src>
import functools

import numpy as np

import jax
import jax.numpy as jnp
from jax.experimental import pallas as pl
from jax.experimental.pallas import tpu as pltpu


def _round_up(v: int, m: int) -> int:
    return ((v + m - 1) // m) * m


def _masked_adjacency_kernel(src_ref, dst_ref, mask_ref, x_ref, w_ref, b_ref,
                             out_ref, a_acc):
    """Accumulate masked adjacency per edge tile; project A @ x @ W + b at the end."""
    k = pl.program_id(0)                       # edge tile index (reduction axis)

    @pl.when(k == 0)
    def _init():
        a_acc[...] = jnp.zeros_like(a_acc)

    n_out, n_x = a_acc.shape                   # output rows / source-node columns
    e_t = src_ref.shape[1]                     # edge tile size (lane axis)

    src_ids = src_ref[...]                     # (1, E_t) int32, lane-dense
    dst_ids = dst_ref[...]                     # (1, E_t) int32, lane-dense
    mask_v = mask_ref[...]                     # (1, E_t) f32, raw values (apply_sigmoid=False)

    # Masked source one-hot, transposed (nodes x edges); edge mask folded in via
    # a select, so padded edges (mask 0) contribute nothing.
    node_iota = jax.lax.broadcasted_iota(jnp.int32, (n_x, e_t), 0)
    msrc_t = jnp.where(node_iota == src_ids, mask_v, 0.0)          # (n_x, E_t) f32

    # Destination one-hot (output rows x edges); padded / filtered-out edges
    # carry dst = -1 and match no row.
    row_iota = jax.lax.broadcasted_iota(jnp.int32, (n_out, e_t), 0)
    dst_oh = (row_iota == dst_ids).astype(jnp.float32)             # (n_out, E_t) f32

    # A[d, s] += sum_e mask_e * [dst_e == d] * [src_e == s]
    # Contract the edge (lane) axis of both one-hots: (n_out, E_t) x (n_x, E_t)^T.
    a_acc[...] += jax.lax.dot_general(
        dst_oh, msrc_t,
        dimension_numbers=(((1,), (1,)), ((), ())),
        preferred_element_type=jnp.float32)

    @pl.when(k == pl.num_programs(0) - 1)
    def _finalize():
        # out = A @ x @ W + b ; the small-K (F) matmul runs exactly once per call.
        ax = jnp.dot(a_acc[...], x_ref[...], preferred_element_type=jnp.float32)
        out_ref[...] = (jnp.dot(ax, w_ref[...], preferred_element_type=jnp.float32)
                        + b_ref[...]).astype(out_ref.dtype)


@functools.partial(jax.jit, static_argnames=("n_out", "edge_tile"))
def _masked_conv_forward(src_row, dst_row, mask_row, x_p, w_p, b_p, *,
                         n_out, edge_tile):
    e_pad = src_row.shape[1]
    n_x, f = x_p.shape
    hp = w_p.shape[1]
    num_e = e_pad // edge_tile

    flops = (2 * n_out * n_x * e_pad          # adjacency accumulation (per edge)
             + 2 * n_out * n_x * f            # A @ x (once)
             + 2 * n_out * f * hp)            # (A @ x) @ W (once)
    bytes_accessed = 4 * (3 * e_pad + n_x * f + f * hp + hp + n_out * hp)

    grid_spec = pltpu.PrefetchScalarGridSpec(
        num_scalar_prefetch=0,
        grid=(num_e,),
        in_specs=[
            pl.BlockSpec((1, edge_tile), lambda k: (0, k)),   # src ids, lane-dense
            pl.BlockSpec((1, edge_tile), lambda k: (0, k)),   # dst ids, lane-dense
            pl.BlockSpec((1, edge_tile), lambda k: (0, k)),   # edge mask, lane-dense
            pl.BlockSpec((n_x, f), lambda k: (0, 0)),         # x, fully resident
            pl.BlockSpec((f, hp), lambda k: (0, 0)),          # W (H padded to 128)
            pl.BlockSpec((1, hp), lambda k: (0, 0)),          # bias row
        ],
        # Constant output block index across the grid -> resident; written once
        # at the last edge tile (lane-dense, unmasked stores).
        out_specs=pl.BlockSpec((n_out, hp), lambda k: (0, 0)),
        scratch_shapes=[pltpu.VMEM((n_out, n_x), jnp.float32)],   # adjacency acc
    )
    return pl.pallas_call(
        _masked_adjacency_kernel,
        out_shape=jax.ShapeDtypeStruct((n_out, hp), jnp.float32),
        grid_spec=grid_spec,
        compiler_params=pltpu.CompilerParams(
            # Single edge-reduction axis (accumulator resident across it).
            dimension_semantics=("arbitrary",),
            # 32 MiB is safe on every generation (v7x physical VMEM is 64 MiB);
            # raise toward 64-96 MiB on v5e/v6e (128 MiB) if edge_tile / N grow,
            # and keep (n_out * n_x + 2 * n_x * edge_tile) * 4 well under the
            # limit on v7x.
            vmem_limit_bytes=32 * 1024 * 1024,
        ),
        cost_estimate=pl.CostEstimate(flops=flops, transcendentals=0,
                                      bytes_accessed=bytes_accessed),
    )(src_row, dst_row, mask_row, x_p, w_p, b_p)


class CaptumModelPallas:
    """JAX/Pallas equivalent of CaptumModel wrapping a masked GCN conv."""

    def __init__(self, weight, bias, mask_type: str = "edge",
                 output_idx=None, edge_tile: int = 512):
        assert mask_type in ["edge", "node", "node_and_edge"]
        assert mask_type == "edge"              # see TODO(synk) at top of file
        assert edge_tile % 128 == 0 and edge_tile >= 128
        self.mask_type = mask_type
        self.output_idx = output_idx
        self.edge_tile = edge_tile

        w = jnp.asarray(weight, jnp.float32)    # [F, H]
        b = jnp.asarray(bias, jnp.float32)      # [H]
        self.f, self.h = w.shape
        self.hp = _round_up(self.h, 128)        # lane-dense output width
        # Static padding hoisted out of the per-call path.
        self.weight_p = jnp.zeros((self.f, self.hp), jnp.float32).at[:, :self.h].set(w)
        self.bias_p = jnp.zeros((1, self.hp), jnp.float32).at[0, :self.h].set(b)

        # Cached padded edge layout, keyed on the edge_index object (attribution
        # loops reuse the same edge_index; only the mask values change).
        self._edge_cache = None

    # ------------------------------------------------------------------ edges
    def _prepare_edges(self, edge_index):
        c = self._edge_cache
        if c is not None and c[0] is edge_index:
            return c[1]

        ei_np = None
        if self.output_idx is not None:
            try:
                ei_np = np.asarray(edge_index)      # host copy; fails for tracers
            except Exception:
                ei_np = None

        if ei_np is not None:
            # Fast path: keep only edges whose destination is output_idx.  Their
            # destination is remapped to output row 0; padding (-1) matches no row.
            sel_np = np.flatnonzero(ei_np[1] == int(self.output_idx)).astype(np.int32)
            n_sel = int(sel_np.shape[0])
            e_pad = max(self.edge_tile, _round_up(max(n_sel, 1), self.edge_tile))
            src_np = ei_np[0][sel_np].astype(np.int32)
            src_row = jnp.pad(jnp.asarray(src_np, jnp.int32),
                              (0, e_pad - n_sel)).reshape(1, e_pad)
            dst_row = jnp.pad(jnp.zeros((n_sel,), jnp.int32),
                              (0, e_pad - n_sel), constant_values=-1).reshape(1, e_pad)
            sel = jnp.asarray(sel_np)
        else:
            # Full edge set (also used as the output_idx fallback for traced inputs).
            e = edge_index.shape[1]
            src = edge_index[0].astype(jnp.int32)
            dst = edge_index[1].astype(jnp.int32)
            if self.output_idx is not None:
                dst = jnp.where(dst == self.output_idx, 0, -1).astype(jnp.int32)
            n_sel = e
            e_pad = max(self.edge_tile, _round_up(max(e, 1), self.edge_tile))
            src_row = jnp.pad(src, (0, e_pad - e)).reshape(1, e_pad)
            dst_row = jnp.pad(dst, (0, e_pad - e), constant_values=-1).reshape(1, e_pad)
            sel = None

        prepared = (src_row, dst_row, sel, n_sel, e_pad)
        self._edge_cache = (edge_index, prepared)
        return prepared

    # ---------------------------------------------------------------- forward
    def __call__(self, mask, x, edge_index):
        # forward(mask, *args) with args = (x, edge_index), mask_type == 'edge'.
        assert mask.shape[0] == 1, "Dimension 0 of input should be 1"
        # set_masks(..., apply_sigmoid=False): raw mask values; clear_masks is a
        # no-op here because the mask never outlives this call.
        edge_mask = mask[0].astype(jnp.float32)

        src_row, dst_row, sel, n_sel, e_pad = self._prepare_edges(edge_index)
        mask_kept = edge_mask if sel is None else edge_mask[sel]
        mask_row = jnp.pad(mask_kept, (0, e_pad - mask_kept.shape[0])).reshape(1, e_pad)

        n, f = x.shape
        assert f == self.f
        n_x = _round_up(max(n, 1), 8)
        x_p = x.astype(jnp.float32)
        if n_x != n:
            x_p = jnp.pad(x_p, ((0, n_x - n), (0, 0)))

        # output_idx fast path only ever materialises an 8-row output tile.
        n_out = 8 if self.output_idx is not None else _round_up(n, 8)

        out_p = _masked_conv_forward(src_row, dst_row, mask_row, x_p,
                                     self.weight_p, self.bias_p,
                                     n_out=n_out, edge_tile=self.edge_tile)

        if self.output_idx is not None:
            return out_p[0:1, :self.h]          # x[output_idx].unsqueeze(0)
        return out_p[:n, :self.h]


# ---------------------------------------------------------------------- test
def _reference(mask, x, edge_index, w, b, output_idx):
    edge_mask = mask[0]
    msg = (x[edge_index[0]] @ w) * edge_mask[:, None]
    out = jnp.zeros((x.shape[0], w.shape[1]), jnp.float32)
    out = out.at[edge_index[1]].add(msg) + b[None, :]
    if output_idx is not None:
        out = out[output_idx][None, :]
    return out


if __name__ == "__main__":
    key = jax.random.PRNGKey(0)
    k_x, k_s, k_d, k_m, k_m2, k_w, k_b = jax.random.split(key, 7)

    # Small shapes; edge_tile=128 gives 2 edge tiles in the full path so the
    # edge-reduction accumulator is exercised.
    N, F, H, E = 48, 16, 32, 200
    x = jax.random.normal(k_x, (N, F), dtype=jnp.float32)
    edge_index = jnp.stack([
        jax.random.randint(k_s, (E,), 0, N),
        jax.random.randint(k_d, (E,), 0, N),
    ], axis=0)                                              # [2, E]
    mask = jax.random.uniform(k_m, (1, E), dtype=jnp.float32)

    weight = jax.random.normal(k_w, (F, H), dtype=jnp.float32) / jnp.sqrt(F)
    bias = jax.random.normal(k_b, (H,), dtype=jnp.float32) * 0.1

    # Path 1: single-node output (the Captum attribution use case) with
    # host-side edge pre-filtering.
    model_sel = CaptumModelPallas(weight, bias, mask_type="edge",
                                  output_idx=3, edge_tile=128)
    out_sel = jax.block_until_ready(model_sel(mask, x, edge_index))
    ref_sel = _reference(mask, x, edge_index, weight, bias, output_idx=3)
    assert out_sel.shape == (1, H)
    assert jnp.allclose(out_sel, ref_sel, atol=1e-3, rtol=1e-3)

    # Second call with a new mask but the same edge_index (exercises the cached
    # padded edge layout used by attribution loops).
    mask2 = jax.random.uniform(k_m2, (1, E), dtype=jnp.float32)
    out_sel2 = jax.block_until_ready(model_sel(mask2, x, edge_index))
    ref_sel2 = _reference(mask2, x, edge_index, weight, bias, output_idx=3)
    assert jnp.allclose(out_sel2, ref_sel2, atol=1e-3, rtol=1e-3)

    # Path 2: full [N, H] output (output_idx=None), exercising the multi-tile
    # edge reduction and the resident output accumulator.
    model_full = CaptumModelPallas(weight, bias, mask_type="edge",
                                   output_idx=None, edge_tile=128)
    out_full = jax.block_until_ready(model_full(mask, x, edge_index))
    ref_full = _reference(mask, x, edge_index, weight, bias, output_idx=None)
    assert out_full.shape == (N, H)
    assert jnp.allclose(out_full, ref_full, atol=1e-3, rtol=1e-3)

    print("KERNEL_OK")
</pallas_src>

<mosaic_0001>
module attributes {stable_mosaic.version = 11 : i64} {
  func.func @_masked_adjacency_kernel(%arg0: i32, %arg1: memref<1x128xi32, #tpu.memory_space<vmem>>, %arg2: memref<1x128xi32, #tpu.memory_space<vmem>>, %arg3: memref<1x128xf32, #tpu.memory_space<vmem>>, %arg4: memref<48x16xf32, #tpu.memory_space<vmem>>, %arg5: memref<16x128xf32, #tpu.memory_space<vmem>>, %arg6: memref<1x128xf32, #tpu.memory_space<vmem>>, %arg7: memref<8x128xf32, #tpu.memory_space<vmem>>, %arg8: memref<8x48xf32, #tpu.memory_space<vmem>>) attributes {dimension_semantics = [#tpu.dimension_semantics<arbitrary>], iteration_bounds = array<i64: 1>, scalar_prefetch = 0 : i64, scratch_operands = 1 : i64, tpu.core_type = #tpu.core_type<tc>, window_params = [{transform_indices = @transform_0, window_bounds = array<i64: 1, 128>}, {transform_indices = @transform_1, window_bounds = array<i64: 1, 128>}, {transform_indices = @transform_2, window_bounds = array<i64: 1, 128>}, {pipeline_mode = #tpu.pipeline_mode<synchronous>, transform_indices = @transform_3, window_bounds = array<i64: 48, 16>}, {pipeline_mode = #tpu.pipeline_mode<synchronous>, transform_indices = @transform_4, window_bounds = array<i64: 16, 128>}, {pipeline_mode = #tpu.pipeline_mode<synchronous>, transform_indices = @transform_5, window_bounds = array<i64: 1, 128>}, {pipeline_mode = #tpu.pipeline_mode<synchronous>, transform_indices = @transform_6, window_bounds = array<i64: 8, 128>}]} {
    %c0_i32 = arith.constant 0 : i32
    %0 = arith.cmpi eq, %arg0, %c0_i32 : i32
    %1 = arith.extui %0 : i1 to i32
    %c0_i32_0 = arith.constant 0 : i32
    %2 = arith.cmpi ne, %1, %c0_i32_0 : i32
    scf.if %2 {
      %cst_13 = arith.constant 0.000000e+00 : f32
      %25 = vector.broadcast %cst_13 : f32 to vector<8x48xf32>
      %c0_14 = arith.constant 0 : index
      %c0_15 = arith.constant 0 : index
      %26 = vector.load %arg8[%c0_14, %c0_15] : memref<8x48xf32, #tpu.memory_space<vmem>>, vector<8x48xf32>
      tpu.vector_store %arg8[%c0_14, %c0_15], %25 {strides = array<i32>} : memref<8x48xf32, #tpu.memory_space<vmem>>, vector<8x48xf32>,
    } else {
    }
    %c0 = arith.constant 0 : index
    %c0_1 = arith.constant 0 : index
    %3 = vector.load %arg1[%c0, %c0_1] : memref<1x128xi32, #tpu.memory_space<vmem>>, vector<1x128xi32>
    %c0_2 = arith.constant 0 : index
    %c0_3 = arith.constant 0 : index
    %4 = vector.load %arg2[%c0_2, %c0_3] : memref<1x128xi32, #tpu.memory_space<vmem>>, vector<1x128xi32>
    %c0_4 = arith.constant 0 : index
    %c0_5 = arith.constant 0 : index
    %5 = vector.load %arg3[%c0_4, %c0_5] : memref<1x128xf32, #tpu.memory_space<vmem>>, vector<1x128xf32>
    %6 = tpu.iota {dimensions = array<i32: 0>} : vector<48x128xi32>
    %7 = vector.broadcast %3 : vector<1x128xi32> to vector<48x128xi32>
    %8 = arith.cmpi eq, %6, %7 : vector<48x128xi32>
    %cst = arith.constant 0.000000e+00 : f32
    %9 = vector.shape_cast %5 : vector<1x128xf32> to vector<1x128xf32>
    %10 = vector.broadcast %9 : vector<1x128xf32> to vector<48x128xf32>
    %11 = vector.broadcast %cst : f32 to vector<48x128xf32>
    %12 = arith.select %8, %10, %11 : vector<48x128xi1>, vector<48x128xf32>
    %13 = tpu.iota {dimensions = array<i32: 0>} : vector<8x128xi32>
    %14 = vector.broadcast %4 : vector<1x128xi32> to vector<8x128xi32>
    %15 = arith.cmpi eq, %13, %14 : vector<8x128xi32>
    %16 = arith.extui %15 : vector<8x128xi1> to vector<8x128xi32>
    %17 = arith.sitofp %16 : vector<8x128xi32> to vector<8x128xf32>
    %c0_6 = arith.constant 0 : index
    %c0_7 = arith.constant 0 : index
    %18 = vector.load %arg8[%c0_6, %c0_7] : memref<8x48xf32, #tpu.memory_space<vmem>>, vector<8x48xf32>
    %cst_8 = arith.constant dense<0.000000e+00> : vector<8x48xf32>
    %19 = tpu.matmul %17, %12, %cst_8 {dimension_numbers = #tpu.dot_dimension_numbers<[1], [1], [0], [0], [0, 0, 1, 0], [], []>} : vector<8x128xf32>, vector<48x128xf32>, vector<8x48xf32> -> vector<8x48xf32>
    %20 = arith.addf %18, %19 : vector<8x48xf32>
    %c0_9 = arith.constant 0 : index
    %c0_10 = arith.constant 0 : index
    %21 = vector.load %arg8[%c0_9, %c0_10] : memref<8x48xf32, #tpu.memory_space<vmem>>, vector<8x48xf32>
    tpu.vector_store %arg8[%c0_9, %c0_10], %20 {strides = array<i32>} : memref<8x48xf32, #tpu.memory_space<vmem>>, vector<8x48xf32>,
    %c0_i32_11 = arith.constant 0 : i32
    %22 = arith.cmpi eq, %arg0, %c0_i32_11 : i32
    %23 = arith.extui %22 : i1 to i32
    %c0_i32_12 = arith.constant 0 : i32
    %24 = arith.cmpi ne, %23, %c0_i32_12 : i32
    scf.if %24 {
      %c0_13 = arith.constant 0 : index
      %c0_14 = arith.constant 0 : index
      %25 = vector.load %arg8[%c0_13, %c0_14] : memref<8x48xf32, #tpu.memory_space<vmem>>, vector<8x48xf32>
      %c0_15 = arith.constant 0 : index
      %c0_16 = arith.constant 0 : index
      %26 = vector.load %arg4[%c0_15, %c0_16] : memref<48x16xf32, #tpu.memory_space<vmem>>, vector<48x16xf32>
      %cst_17 = arith.constant dense<0.000000e+00> : vector<8x16xf32>
      %27 = tpu.matmul %25, %26, %cst_17 {dimension_numbers = #tpu.dot_dimension_numbers<[1], [0], [0], [1], [0, 0, 1, 1], [], []>} : vector<8x48xf32>, vector<48x16xf32>, vector<8x16xf32> -> vector<8x16xf32>
      %c0_18 = arith.constant 0 : index
      %c0_19 = arith.constant 0 : index
      %28 = vector.load %arg5[%c0_18, %c0_19] : memref<16x128xf32, #tpu.memory_space<vmem>>, vector<16x128xf32>
      %cst_20 = arith.constant dense<0.000000e+00> : vector<8x128xf32>
      %29 = tpu.matmul %27, %28, %cst_20 {dimension_numbers = #tpu.dot_dimension_numbers<[1], [0], [0], [1], [0, 0, 1, 1], [], []>} : vector<8x16xf32>, vector<16x128xf32>, vector<8x128xf32> -> vector<8x128xf32>
      %c0_21 = arith.constant 0 : index
      %c0_22 = arith.constant 0 : index
      %30 = vector.load %arg6[%c0_21, %c0_22] : memref<1x128xf32, #tpu.memory_space<vmem>>, vector<1x128xf32>
      %31 = vector.broadcast %30 : vector<1x128xf32> to vector<8x128xf32>
      %32 = arith.addf %29, %31 : vector<8x128xf32>
      %c0_23 = arith.constant 0 : index
      %c0_24 = arith.constant 0 : index
      %33 = vector.load %arg7[%c0_23, %c0_24] : memref<8x128xf32, #tpu.memory_space<vmem>>, vector<8x128xf32>
      tpu.vector_store %arg7[%c0_23, %c0_24], %32 {strides = array<i32>} : memref<8x128xf32, #tpu.memory_space<vmem>>, vector<8x128xf32>,
    } else {
    }
    return
  }
  func.func @transform_0(%arg0: i32) -> (i32, i32) {
    %c0_i32 = arith.constant 0 : i32
    %c0_i32_0 = arith.constant 0 : i32
    return %c0_i32, %arg0 : i32, i32
  }
  func.func @transform_1(%arg0: i32) -> (i32, i32) {
    %c0_i32 = arith.constant 0 : i32
    %c0_i32_0 = arith.constant 0 : i32
    return %c0_i32, %arg0 : i32, i32
  }
  func.func @transform_2(%arg0: i32) -> (i32, i32) {
    %c0_i32 = arith.constant 0 : i32
    %c0_i32_0 = arith.constant 0 : i32
    return %c0_i32, %arg0 : i32, i32
  }
  func.func @transform_3(%arg0: i32) -> (i32, i32) {
    %c0_i32 = arith.constant 0 : i32
    %c0_i32_0 = arith.constant 0 : i32
    %c0_i32_1 = arith.constant 0 : i32
    return %c0_i32, %c0_i32_0 : i32, i32
  }
  func.func @transform_4(%arg0: i32) -> (i32, i32) {
    %c0_i32 = arith.constant 0 : i32
    %c0_i32_0 = arith.constant 0 : i32
    %c0_i32_1 = arith.constant 0 : i32
    return %c0_i32, %c0_i32_0 : i32, i32
  }
  func.func @transform_5(%arg0: i32) -> (i32, i32) {
    %c0_i32 = arith.constant 0 : i32
    %c0_i32_0 = arith.constant 0 : i32
    %c0_i32_1 = arith.constant 0 : i32
    return %c0_i32, %c0_i32_0 : i32, i32
  }
  func.func @transform_6(%arg0: i32) -> (i32, i32) {
    %c0_i32 = arith.constant 0 : i32
    %c0_i32_0 = arith.constant 0 : i32
    %c0_i32_1 = arith.constant 0 : i32
    return %c0_i32, %c0_i32_0 : i32, i32
  }
}

</mosaic_0001>

<llo_original>
// kernel: _masked_conv_forward.1
$region0: #{_masked_conv_forward.1}
  #allocation0 [shape = 'u32[]', space=smem, size = 0x4, offset = 0x4, fixed_abs, tag = 'smem constant byte address 0x4 - core index']
  #allocation1 [shape = 'u32[144,128]{1,0:T(1,128)}', space=vmem, size = 0x12000, scoped, tag = 'internal scratch']
  #allocation2 [shape = 'f32[8,48]{1,0:T(8,128)}', space=vmem, size = 0x1000, scoped, tag = 'scratch operand']
  %s0 = inlined_call_operand.vmem [shape: s32[1,128], index: 0, kind: input, shape index: {}]
  %s1 = inlined_call_operand.vmem [shape: s32[1,128], index: 1, kind: input, shape index: {}]
  %s2 = inlined_call_operand.vmem [shape: f32[1,128], index: 2, kind: input, shape index: {}]
  %s3 = inlined_call_operand.vmem [shape: f32[48,16], index: 3, kind: input, shape index: {}]
  %s4 = inlined_call_operand.vmem [shape: f32[16,128], index: 4, kind: input, shape index: {}]
  %s5 = inlined_call_operand.vmem [shape: f32[1,128], index: 5, kind: input, shape index: {}]
  %s6 = inlined_call_operand.hbm [shape: f32[8,128], index: 6, kind: output, shape index: {}]
  %s7 = sld [smem:[#allocation0]]
  $region42: #{_masked_conv_forward.1} parent=0
    _
  %s9 = ssub.s32 1, %s7
  %s10 = scalar_select 0, %s9, %s7
  $region1: #{_masked_conv_forward.1} parent=0
    #allocation3 [shape = 'u8[4096]{0}', space=vmem, size = 0x1000, scoped, tag = 'output window, operand 0, single buffered']
    #allocation4 [shape = 's32[1]{0}', space=sflag, size = 0x4, scoped, tag = 'scoped memory for _masked_conv_forward.1']
    %11 = vsyncpa [#allocation4], 0
    // Predicated region
    $region2: #{_masked_conv_forward.1} parent=1 // pred_check
      _
    $region3: #{_masked_conv_forward.1} parent=1 // pred_check_branch
      %13 = sbr.rel (0) target = $region5
    $region4: #{_masked_conv_forward.1} parent=1 // pred_region
      _
    $region5: #{_masked_conv_forward.1} parent=1 // pred_fallthru
      _
    // Predicated region
    $region6: #{_masked_conv_forward.1} parent=1 // pred_check
      _
    $region7: #{_masked_conv_forward.1} parent=1 // pred_check_branch
      %15 = sbr.rel (0) target = $region9
    $region8: #{_masked_conv_forward.1} parent=1 // pred_region
      _
    $region9: #{_masked_conv_forward.1} parent=1 // pred_fallthru
      _
    // Predicated region
    $region10: #{_masked_conv_forward.1} parent=1 // pred_check
      _
    $region11: #{_masked_conv_forward.1} parent=1 // pred_check_branch
      %17 = sbr.rel (0) target = $region13
    $region12: #{_masked_conv_forward.1} parent=1 // pred_region
      _
    $region13: #{_masked_conv_forward.1} parent=1 // pred_fallthru
      _
    // Predicated region
    $region14: #{_masked_conv_forward.1} parent=1 // pred_check
      _
    $region15: #{_masked_conv_forward.1} parent=1 // pred_check_branch
      %19 = sbr.rel (0) target = $region17
    $region16: #{_masked_conv_forward.1} parent=1 // pred_region
      _
    $region17: #{_masked_conv_forward.1} parent=1 // pred_fallthru
      _
    // Predicated region
    $region18: #{_masked_conv_forward.1} parent=1 // pred_check
      _
    $region19: #{_masked_conv_forward.1} parent=1 // pred_check_branch
      %21 = sbr.rel (0) target = $region21
    $region20: #{_masked_conv_forward.1} parent=1 // pred_region
      _
    $region21: #{_masked_conv_forward.1} parent=1 // pred_fallthru
      _
    // Predicated region
    $region22: #{_masked_conv_forward.1} parent=1 // pred_check
      _
    $region23: #{_masked_conv_forward.1} parent=1 // pred_check_branch
      %23 = sbr.rel (0) target = $region25
    $region24: #{_masked_conv_forward.1} parent=1 // pred_region
      _
    $region25: #{_masked_conv_forward.1} parent=1 // pred_fallthru
      _
    %p24 = scmp.eq.s32.totalorder 0, 0
    // Predicated region
    $region26: #{_masked_conv_forward.1} parent=1 // pred_check
      %p25 = pneg %p24
    $region27: #{_masked_conv_forward.1} parent=1 // pred_check_branch
      %27 = sbr.rel (%p25) target = $region29
    $region28: #{_masked_conv_forward.1} parent=1 // pred_region
      %vm28 = vcmask 392192
      %29 = vst.msk [vmem:[#allocation2] sm:$0xff] %vm28, 0.0
    $region29: #{_masked_conv_forward.1} parent=1 // pred_fallthru
      _
    %v30 = vld [vmem:[%s0] sm:$0x1]
    %v31 = vld [vmem:[%s1] sm:$0x1]
    %v32 = vld [vmem:[%s2] sm:$0x1]
    %v33 = vlaneseq
    %v34 = vshrl.u32 %v33, 7
    %v35 = vadd.s32 %v34, 8
    %v36 = vadd.s32 %v34, 16
    %v37 = vadd.s32 %v34, 24
    %v38 = vadd.s32 %v34, 32
    %v39 = vadd.s32 %v34, 40
    %v40 = vlaneseq
    %v41 = vshrl.u32 %v40, 7
    %v42 = vsub.s32 0, %v41
    %v43 = vrot.slane %v30, %v42
    %vm44 = vcmp.eq.s32.totalorder %v34, %v43
    %vm45 = vcmp.eq.s32.totalorder %v35, %v43
    %vm46 = vcmp.eq.s32.totalorder %v36, %v43
    %vm47 = vcmp.eq.s32.totalorder %v37, %v43
    %vm48 = vcmp.eq.s32.totalorder %v38, %v43
    %vm49 = vcmp.eq.s32.totalorder %v39, %v43
    %v51 = vlaneseq
    %v52 = vshrl.u32 %v51, 7
    %v53 = vsub.s32 0, %v52
    %v54 = vrot.slane %v32, %v53
    %v56 = vsel %vm44, %v54, 0.0
    %v57 = vsel %vm45, %v54, 0.0
    %v58 = vsel %vm46, %v54, 0.0
    %v59 = vsel %vm47, %v54, 0.0
    %v60 = vsel %vm48, %v54, 0.0
    %v61 = vsel %vm49, %v54, 0.0
    %v62 = vlaneseq
    %v63 = vshrl.u32 %v62, 7
    %v64 = vsub.s32 0, %v63
    %v65 = vrot.slane %v31, %v64
    %vm66 = vcmp.eq.s32.totalorder %v34, %v65
    %v67 = vsel %vm66, 1, 0
    %v68 = vcvt.s32.f32 %v67
    %v69 = vld [vmem:[#allocation2] sm:$0xff]
    %70 = vmatprep.subr.mxu0 0.0
    %71 = vmatpush1.xpose.msra.mxu0 0.0
    %72 = vmatprep.subr.mxu0 0.0
    %73 = vmatpush1.xpose.msra.mxu0 0.0
    %74 = vmatprep.subr.mxu0 0.0
    %75 = vmatpush1.xpose.msra.mxu0 0.0
    %76 = vmatprep.subr.mxu0 0.0
    %77 = vmatpush1.xpose.msra.mxu0 0.0
    %78 = vmatprep.subr.mxu0 0.0
    %79 = vmatpush1.xpose.msra.mxu0 0.0
    %80 = vmatprep.subr.mxu0 0.0
    %81 = vmatpush1.xpose.msra.mxu0 0.0
    %82 = vmatprep.subr.mxu0 0.0
    %83 = vmatpush1.xpose.msra.mxu0 0.0
    %84 = vmatprep.subr.mxu0 0.0
    %85 = vmatpush1.xpose.msra.mxu0 0.0
    %86 = vmatprep.subr.mxu0 0.0
    %87 = vmatpush1.xpose.msra.mxu0 0.0
    %88 = vmatprep.subr.mxu0 0.0
    %89 = vmatpush1.xpose.msra.mxu0 0.0
    %90 = vmatprep.subr.mxu0 0.0
    %91 = vmatpush1.xpose.msra.mxu0 %v61
    %92 = vmatprep.subr.mxu0 0.0
    %93 = vmatpush1.xpose.msra.mxu0 %v60
    %94 = vmatprep.subr.mxu0 0.0
    %95 = vmatpush1.xpose.msra.mxu0 %v59
    %96 = vmatprep.subr.mxu0 0.0
    %97 = vmatpush1.xpose.msra.mxu0 %v58
    %98 = vmatprep.subr.mxu0 0.0
    %99 = vmatpush1.xpose.msra.mxu0 %v57
    %100 = vmatprep.subr.mxu0 0.0
    %101 = vmatpush1.xpose.msra.mxu0 %v56
    %102 = vmatprep.subr.mxu0 0.0
    %103 = vmatpush2.xpose.msra.mxu0 0.0
    %104 = vmatprep.subr.mxu0 0.0
    %105 = vmatpush2.xpose.msra.mxu0 0.0
    %106 = vmatprep.subr.mxu0 0.0
    %107 = vmatpush2.xpose.msra.mxu0 0.0
    %108 = vmatprep.subr.mxu0 0.0
    %109 = vmatpush2.xpose.msra.mxu0 0.0
    %110 = vmatprep.subr.mxu0 0.0
    %111 = vmatpush2.xpose.msra.mxu0 0.0
    %112 = vmatprep.subr.mxu0 0.0
    %113 = vmatpush2.xpose.msra.mxu0 0.0
    %114 = vmatprep.subr.mxu0 0.0
    %115 = vmatpush2.xpose.msra.mxu0 0.0
    %116 = vmatprep.subr.mxu0 0.0
    %117 = vmatpush2.xpose.msra.mxu0 0.0
    %118 = vmatprep.subr.mxu0 0.0
    %119 = vmatpush2.xpose.msra.mxu0 0.0
    %120 = vmatprep.subr.mxu0 0.0
    %121 = vmatpush2.xpose.msra.mxu0 0.0
    %122 = vmatprep.subr.mxu0 0.0
    %123 = vmatpush2.xpose.msra.mxu0 0.0
    %124 = vmatprep.subr.mxu0 0.0
    %125 = vmatpush2.xpose.msra.mxu0 0.0
    %126 = vmatprep.subr.mxu0 0.0
    %127 = vmatpush2.xpose.msra.mxu0 0.0
    %128 = vmatprep.subr.mxu0 0.0
    %129 = vmatpush2.xpose.msra.mxu0 0.0
    %130 = vmatprep.subr.mxu0 0.0
    %131 = vmatpush2.xpose.msra.mxu0 0.0
    %132 = vmatprep.subr.mxu0 0.0
    %133 = vmatpush2.xpose.msra.mxu0 0.0
    %134 = vmatprep.mubr.f32.mxu0 0.0
    %135 = vmatmul.mubr.f32.gmra.mxu0 %v68
    %v136 = vpop.f32.mrf.mxu0
    %v137 = vadd.f32 0.0, %v136
    %v138 = vpop.f32.mrf.mxu0
    %139 = vdwg.mxu0
    %v140 = vadd.f32 %v69, %v137
    %vm141 = vcmask 392192
    %142 = vst.msk [vmem:[#allocation2] sm:$0xff] %vm141, %v140
    // Predicated region
    $region30: #{_masked_conv_forward.1} parent=1 // pred_check
      %p143 = pneg %p24
    $region31: #{_masked_conv_forward.1} parent=1 // pred_check_branch
      %145 = sbr.rel (%p143) target = $region33
    $region32: #{_masked_conv_forward.1} parent=1 // pred_region
      %v146 = vld [vmem:[#allocation2] sm:$0xff]
      %v147 = vld [vmem:[%s3] sm:$0xff]
      %v148 = vld [vmem:[%s3 + $0x8] sm:$0xff]
      %v149 = vld [vmem:[%s3 + $0x10] sm:$0xff]
      %v150 = vld [vmem:[%s3 + $0x18] sm:$0xff]
      %v151 = vld [vmem:[%s3 + $0x20] sm:$0xff]
      %v152 = vld [vmem:[%s3 + $0x28] sm:$0xff]
      %v154 = vsel %vm141, %v146, 0
      %156 = vmatprep.subr.mxu0 0.0
      %157 = vmatpush1.msra.mxu0 0.0
      %158 = vmatprep.subr.mxu0 0.0
      %159 = vmatpush1.msra.mxu0 0.0
      %160 = vmatprep.subr.mxu0 0.0
      %161 = vmatpush1.msra.mxu0 0.0
      %162 = vmatprep.subr.mxu0 0.0
      %163 = vmatpush1.msra.mxu0 0.0
      %164 = vmatprep.subr.mxu0 0.0
      %165 = vmatpush1.msra.mxu0 0.0
      %166 = vmatprep.subr.mxu0 0.0
      %167 = vmatpush1.msra.mxu0 0.0
      %168 = vmatprep.subr.mxu0 0.0
      %169 = vmatpush1.msra.mxu0 0.0
      %170 = vmatprep.subr.mxu0 0.0
      %171 = vmatpush1.msra.mxu0 0.0
      %172 = vmatprep.subr.mxu0 0.0
      %173 = vmatpush1.msra.mxu0 0.0
      %174 = vmatprep.subr.mxu0 0.0
      %175 = vmatpush1.msra.mxu0 0.0
      %176 = vmatprep.subr.mxu0 0.0
      %177 = vmatpush1.msra.mxu0 %v152
      %178 = vmatprep.subr.mxu0 0.0
      %179 = vmatpush1.msra.mxu0 %v151
      %180 = vmatprep.subr.mxu0 0.0
      %181 = vmatpush1.msra.mxu0 %v150
      %182 = vmatprep.subr.mxu0 0.0
      %183 = vmatpush1.msra.mxu0 %v149
      %184 = vmatprep.subr.mxu0 0.0
      %185 = vmatpush1.msra.mxu0 %v148
      %186 = vmatprep.subr.mxu0 0.0
      %187 = vmatpush1.msra.mxu0 %v147
      %188 = vmatprep.subr.mxu0 0.0
      %189 = vmatpush2.msra.mxu0 0.0
      %190 = vmatprep.subr.mxu0 0.0
      %191 = vmatpush2.msra.mxu0 0.0
      %192 = vmatprep.subr.mxu0 0.0
      %193 = vmatpush2.msra.mxu0 0.0
      %194 = vmatprep.subr.mxu0 0.0
      %195 = vmatpush2.msra.mxu0 0.0
      %196 = vmatprep.subr.mxu0 0.0
      %197 = vmatpush2.msra.mxu0 0.0
      %198 = vmatprep.subr.mxu0 0.0
      %199 = vmatpush2.msra.mxu0 0.0
      %200 = vmatprep.subr.mxu0 0.0
      %201 = vmatpush2.msra.mxu0 0.0
      %202 = vmatprep.subr.mxu0 0.0
      %203 = vmatpush2.msra.mxu0 0.0
      %204 = vmatprep.subr.mxu0 0.0
      %205 = vmatpush2.msra.mxu0 0.0
      %206 = vmatprep.subr.mxu0 0.0
      %207 = vmatpush2.msra.mxu0 0.0
      %208 = vmatprep.subr.mxu0 0.0
      %209 = vmatpush2.msra.mxu0 0.0
      %210 = vmatprep.subr.mxu0 0.0
      %211 = vmatpush2.msra.mxu0 0.0
      %212 = vmatprep.subr.mxu0 0.0
      %213 = vmatpush2.msra.mxu0 0.0
      %214 = vmatprep.subr.mxu0 0.0
      %215 = vmatpush2.msra.mxu0 0.0
      %216 = vmatprep.subr.mxu0 0.0
      %217 = vmatpush2.msra.mxu0 0.0
      %218 = vmatprep.subr.mxu0 0.0
      %219 = vmatpush2.msra.mxu0 0.0
      %220 = vmatprep.mubr.f32.mxu0 0.0
      %221 = vmatmul.mubr.f32.gmra.mxu0 %v154
      %v222 = vpop.f32.mrf.mxu0
      %v223 = vadd.f32 0.0, %v222
      %v224 = vpop.f32.mrf.mxu0
      %225 = vdwg.mxu0
      %v226 = vld [vmem:[%s4] sm:$0xff]
      %v227 = vld [vmem:[%s4 + $0x8] sm:$0xff]
      %v228 = vld [vmem:[%s5] sm:$0x1]
      %v230 = vlaneseq
      %v231 = vshrl.u32 %v230, 7
      %v232 = vsub.s32 0, %v231
      %v233 = vrot.slane %v228, %v232
      %vm235 = vcmask 130048
      %v237 = vsel %vm235, %v223, 0
      %239 = vmatprep.subr.mxu0 0.0
      %240 = vmatpush1.msra.mxu0 0.0
      %241 = vmatprep.subr.mxu0 0.0
      %242 = vmatpush1.msra.mxu0 0.0
      %243 = vmatprep.subr.mxu0 0.0
      %244 = vmatpush1.msra.mxu0 0.0
      %245 = vmatprep.subr.mxu0 0.0
      %246 = vmatpush1.msra.mxu0 0.0
      %247 = vmatprep.subr.mxu0 0.0
      %248 = vmatpush1.msra.mxu0 0.0
      %249 = vmatprep.subr.mxu0 0.0
      %250 = vmatpush1.msra.mxu0 0.0
      %251 = vmatprep.subr.mxu0 0.0
      %252 = vmatpush1.msra.mxu0 0.0
      %253 = vmatprep.subr.mxu0 0.0
      %254 = vmatpush1.msra.mxu0 0.0
      %255 = vmatprep.subr.mxu0 0.0
      %256 = vmatpush1.msra.mxu0 0.0
      %257 = vmatprep.subr.mxu0 0.0
      %258 = vmatpush1.msra.mxu0 0.0
      %259 = vmatprep.subr.mxu0 0.0
      %260 = vmatpush1.msra.mxu0 0.0
      %261 = vmatprep.subr.mxu0 0.0
      %262 = vmatpush1.msra.mxu0 0.0
      %263 = vmatprep.subr.mxu0 0.0
      %264 = vmatpush1.msra.mxu0 0.0
      %265 = vmatprep.subr.mxu0 0.0
      %266 = vmatpush1.msra.mxu0 0.0
      %267 = vmatprep.subr.mxu0 0.0
      %268 = vmatpush1.msra.mxu0 %v227
      %269 = vmatprep.subr.mxu0 0.0
      %270 = vmatpush1.msra.mxu0 %v226
      %271 = vmatprep.subr.mxu0 0.0
      %272 = vmatpush2.msra.mxu0 0.0
      %273 = vmatprep.subr.mxu0 0.0
      %274 = vmatpush2.msra.mxu0 0.0
      %275 = vmatprep.subr.mxu0 0.0
      %276 = vmatpush2.msra.mxu0 0.0
      %277 = vmatprep.subr.mxu0 0.0
      %278 = vmatpush2.msra.mxu0 0.0
      %279 = vmatprep.subr.mxu0 0.0
      %280 = vmatpush2.msra.mxu0 0.0
      %281 = vmatprep.subr.mxu0 0.0
      %282 = vmatpush2.msra.mxu0 0.0
      %283 = vmatprep.subr.mxu0 0.0
      %284 = vmatpush2.msra.mxu0 0.0
      %285 = vmatprep.subr.mxu0 0.0
      %286 = vmatpush2.msra.mxu0 0.0
      %287 = vmatprep.subr.mxu0 0.0
      %288 = vmatpush2.msra.mxu0 0.0
      %289 = vmatprep.subr.mxu0 0.0
      %290 = vmatpush2.msra.mxu0 0.0
      %291 = vmatprep.subr.mxu0 0.0
      %292 = vmatpush2.msra.mxu0 0.0
      %293 = vmatprep.subr.mxu0 0.0
      %294 = vmatpush2.msra.mxu0 0.0
      %295 = vmatprep.subr.mxu0 0.0
      %296 = vmatpush2.msra.mxu0 0.0
      %297 = vmatprep.subr.mxu0 0.0
      %298 = vmatpush2.msra.mxu0 0.0
      %299 = vmatprep.subr.mxu0 0.0
      %300 = vmatpush2.msra.mxu0 0.0
      %301 = vmatprep.subr.mxu0 0.0
      %302 = vmatpush2.msra.mxu0 0.0
      %303 = vmatprep.mubr.f32.mxu0 0.0
      %304 = vmatmul.mubr.f32.gmra.mxu0 %v237
      %v305 = vpop.f32.mrf.mxu0
      %v306 = vadd.f32 %v233, %v305
      %v307 = vpop.f32.mrf.mxu0
      %308 = vdwg.mxu0
      %309 = vst [vmem:[#allocation3] sm:$0xff] %v306
    $region33: #{_masked_conv_forward.1} parent=1 // pred_fallthru
      _
    // Predicated region
    $region34: #{_masked_conv_forward.1} parent=1 // pred_check
      _
    $region35: #{_masked_conv_forward.1} parent=1 // pred_check_branch
      %311 = sbr.rel (0) target = $region37
    $region36: #{_masked_conv_forward.1} parent=1 // pred_region
      %s313 = ssub.s32 128, 128
      %314 = vsyncadd [#allocation4], %s313
      %s316 = sshll.u32 [#allocation3], 4
      %s317 = int_to_ptr.vmem [resolvable:$true] %s316
      %319 = dma.vmem_to_hbm [thread:$0]  %s317, 128, %s6, [#allocation4]
    $region37: #{_masked_conv_forward.1} parent=1 // pred_fallthru
      _
    // Predicated region
    $region38: #{_masked_conv_forward.1} parent=1 // pred_check
      _
    $region39: #{_masked_conv_forward.1} parent=1 // pred_check_branch
      %321 = sbr.rel (0) target = $region41
    $region40: #{_masked_conv_forward.1} parent=1 // pred_region
      %322 = dma.done [#allocation4], 128
    $region41: #{_masked_conv_forward.1} parent=1 // pred_fallthru
      _
    %323 = vsyncpa [#allocation4], 1

</llo_original>
